<compile_context>
chip_gen: v5e
topology: v5e:2x2
jax: 0.10.0
libtpu: 0.0.40
codegen_flags: <defaults>
</compile_context>

<pallas_src>
import functools

import jax
import jax.numpy as jnp
from jax.experimental import pallas as pl
from jax.experimental.pallas import tpu as pltpu


def _round_up(x: int, m: int) -> int:
    return ((x + m - 1) // m) * m


def _pick_tile(padded: int, unit: int, cap: int) -> int:
    """Largest tile <= cap that is a multiple of `unit` and divides `padded`."""
    best = unit
    t = unit
    limit = min(cap, padded)
    while t <= limit:
        if padded % t == 0:
            best = t
        t += unit
    return best


def _slp_kernel(x_ref, w_ref, b_ref, o_ref, acc_ref):
    """One (tm, tn) output tile; grid axis 2 iterates K tiles (reduction)."""
    k = pl.program_id(2)

    @pl.when(k == 0)
    def _():
        acc_ref[...] = jnp.zeros_like(acc_ref)

    # x tile: (tm, tk); w tile (pre-transposed K-major layout): (tk, tn).
    acc_ref[...] += jnp.dot(
        x_ref[...], w_ref[...], preferred_element_type=jnp.float32
    )

    @pl.when(k == pl.num_programs(2) - 1)
    def _():
        # Epilogue (off the K critical loop): bias + sigmoid via EUP
        # exp + approx reciprocal (keeps the VPU slots free for add/cast).
        z = acc_ref[...] + b_ref[...]
        e = jnp.exp(-z)
        o_ref[...] = pl.reciprocal(1.0 + e, approx=True).astype(o_ref.dtype)


def prepare_slp_params(weight, bias, *, param_dtype=None):
    """One-time parameter prep (do this at model-load time, not per call).

    weight: (out_features, in_features)  -- PyTorch nn.Linear layout.
    bias:   (out_features,)
    Returns (w_kn, bias2d): weight transposed to (K_pad, N_pad) and zero-padded
    to 128-multiples; bias as a (1, N_pad) float32 row.
    """
    N, K = weight.shape
    Kp = _round_up(K, 128)
    Np = _round_up(N, 128)

    w_kn = weight.T  # (K, N): contraction dim on sublanes, N on lanes.
    if param_dtype is not None:
        w_kn = w_kn.astype(param_dtype)
    if (Kp, Np) != (K, N):
        w_kn = jnp.pad(w_kn, ((0, Kp - K), (0, Np - N)))

    b2 = bias.reshape(1, N).astype(jnp.float32)
    if Np != N:
        b2 = jnp.pad(b2, ((0, 0), (0, Np - N)))
    return w_kn, b2


@functools.partial(
    jax.jit, static_argnames=("out_features", "tm_cap", "tn_cap", "tk_cap")
)
def slp_forward(x, w_kn, bias2d, *, out_features, tm_cap=512, tn_cap=512, tk_cap=1024):
    """sigmoid(x @ W.T + b) == torch SLP forward.

    x:       (B, in_features)
    w_kn:    (K_pad, N_pad)   from prepare_slp_params
    bias2d:  (1, N_pad)       from prepare_slp_params
    """
    out_dtype = x.dtype
    B, K = x.shape
    Kp, Np = w_kn.shape
    N = out_features
    assert Kp == _round_up(K, 128), (K, Kp)
    assert bias2d.shape == (1, Np), bias2d.shape
    assert N <= Np

    # Match matmul-operand dtype to the prepared weight (e.g. bf16 inputs,
    # f32 accumulate); output keeps the caller's dtype.
    if x.dtype != w_kn.dtype:
        x = x.astype(w_kn.dtype)

    in_itemsize = x.dtype.itemsize
    out_itemsize = jnp.dtype(out_dtype).itemsize

    # Layout-minimum padding first, then divisor-aware tiles (no over-padding).
    m_unit = 8 if in_itemsize >= 4 else 16  # bf16 packs 2 rows/sublane
    Bp = _round_up(B, m_unit)
    tm = _pick_tile(Bp, m_unit, tm_cap)
    tn = _pick_tile(Np, 128, tn_cap)
    tk = _pick_tile(Kp, 128, tk_cap)

    # Only the activation is padded per call (weight/bias were padded once).
    if (Bp, Kp) != (B, K):
        x = jnp.pad(x, ((0, Bp - B), (0, Kp - K)))

    grid = (Bp // tm, Np // tn, Kp // tk)

    # Double-buffered inputs/output + resident f32 accumulator.
    footprint = (
        2 * (tm * tk + tk * tn) * in_itemsize
        + 2 * tm * tn * out_itemsize
        + tm * tn * 4
        + 2 * tn * 4
    )
    vmem_limit = min(max(int(1.5 * footprint) + (4 << 20), 32 << 20), 48 << 20)

    cost = pl.CostEstimate(
        flops=2 * Bp * Kp * Np,
        transcendentals=Bp * Np,  # exp (+ approx reciprocal) in the epilogue
        bytes_accessed=(
            Bp * Kp * in_itemsize
            + Kp * Np * w_kn.dtype.itemsize
            + Np * 4
            + Bp * Np * out_itemsize
        ),
    )

    out_padded = pl.pallas_call(
        _slp_kernel,
        out_shape=jax.ShapeDtypeStruct((Bp, Np), out_dtype),
        grid_spec=pltpu.PrefetchScalarGridSpec(
            num_scalar_prefetch=0,
            grid=grid,
            in_specs=[
                # x: (tm, tk) tile at (i, k)
                pl.BlockSpec((tm, tk), lambda i, j, k: (i, k)),
                # weight (K, N) layout: (tk, tn) tile at (k, j)
                pl.BlockSpec((tk, tn), lambda i, j, k: (k, j)),
                # bias: (1, tn) tile at (0, j)
                pl.BlockSpec((1, tn), lambda i, j, k: (0, j)),
            ],
            out_specs=pl.BlockSpec((tm, tn), lambda i, j, k: (i, j)),
            scratch_shapes=[pltpu.VMEM((tm, tn), jnp.float32)],
        ),
        compiler_params=pltpu.CompilerParams(
            dimension_semantics=("parallel", "parallel", "arbitrary"),
            vmem_limit_bytes=vmem_limit,
        ),
        cost_estimate=cost,
    )(x, w_kn, bias2d)

    return out_padded[:B, :N]


if __name__ == "__main__":
    # Small shapes consistent with the module: SLP(input_size=32, output_size=8)
    batch, input_size, output_size = 8, 32, 8

    key = jax.random.PRNGKey(0)
    kx, kw, kb = jax.random.split(key, 3)

    x = jax.random.normal(kx, (batch, input_size), dtype=jnp.float32)
    # PyTorch-like uniform(-1/sqrt(in), 1/sqrt(in)) init.
    bound = 1.0 / jnp.sqrt(jnp.float32(input_size))
    weight = jax.random.uniform(
        kw, (output_size, input_size), minval=-bound, maxval=bound, dtype=jnp.float32
    )
    bias = jax.random.uniform(
        kb, (output_size,), minval=-bound, maxval=bound, dtype=jnp.float32
    )

    # One-time parameter prep (transpose + pad happens here, not per call).
    w_kn, b2 = prepare_slp_params(weight, bias)

    out = slp_forward(x, w_kn, b2, out_features=output_size)
    jax.block_until_ready(out)

    # Cross-check against plain-JAX reference of the PyTorch forward.
    ref = jax.nn.sigmoid(x @ weight.T + bias)
    assert out.shape == (batch, output_size)
    # Tolerance accounts for the approx-EUP reciprocal in the sigmoid epilogue.
    assert jnp.allclose(out, ref, atol=5e-3, rtol=5e-3), float(
        jnp.max(jnp.abs(out - ref))
    )

    print("KERNEL_OK")
</pallas_src>

<mosaic_0001>
module attributes {stable_mosaic.version = 11 : i64} {
  func.func @_slp_kernel(%arg0: i32, %arg1: i32, %arg2: i32, %arg3: memref<8x128xf32, #tpu.memory_space<vmem>>, %arg4: memref<128x128xf32, #tpu.memory_space<vmem>>, %arg5: memref<1x128xf32, #tpu.memory_space<vmem>>, %arg6: memref<8x128xf32, #tpu.memory_space<vmem>>, %arg7: memref<8x128xf32, #tpu.memory_space<vmem>>) attributes {dimension_semantics = [#tpu.dimension_semantics<parallel>, #tpu.dimension_semantics<parallel>, #tpu.dimension_semantics<arbitrary>], iteration_bounds = array<i64: 1, 1, 1>, scalar_prefetch = 0 : i64, scratch_operands = 1 : i64, tpu.core_type = #tpu.core_type<tc>, window_params = [{transform_indices = @transform_0, window_bounds = array<i64: 8, 128>}, {transform_indices = @transform_1, window_bounds = array<i64: 128, 128>}, {transform_indices = @transform_2, window_bounds = array<i64: 1, 128>}, {transform_indices = @transform_3, window_bounds = array<i64: 8, 128>}]} {
    %c0_i32 = arith.constant 0 : i32
    %0 = arith.cmpi eq, %arg2, %c0_i32 : i32
    %1 = arith.extui %0 : i1 to i32
    %c0_i32_0 = arith.constant 0 : i32
    %2 = arith.cmpi ne, %1, %c0_i32_0 : i32
    scf.if %2 {
      %cst_10 = arith.constant 0.000000e+00 : f32
      %12 = vector.broadcast %cst_10 : f32 to vector<8x128xf32>
      %c0_11 = arith.constant 0 : index
      %c0_12 = arith.constant 0 : index
      %13 = vector.load %arg7[%c0_11, %c0_12] : memref<8x128xf32, #tpu.memory_space<vmem>>, vector<8x128xf32>
      tpu.vector_store %arg7[%c0_11, %c0_12], %12 {strides = array<i32>} : memref<8x128xf32, #tpu.memory_space<vmem>>, vector<8x128xf32>,
    } else {
    }
    %c0 = arith.constant 0 : index
    %c0_1 = arith.constant 0 : index
    %3 = vector.load %arg7[%c0, %c0_1] : memref<8x128xf32, #tpu.memory_space<vmem>>, vector<8x128xf32>
    %c0_2 = arith.constant 0 : index
    %c0_3 = arith.constant 0 : index
    %4 = vector.load %arg3[%c0_2, %c0_3] : memref<8x128xf32, #tpu.memory_space<vmem>>, vector<8x128xf32>
    %c0_4 = arith.constant 0 : index
    %c0_5 = arith.constant 0 : index
    %5 = vector.load %arg4[%c0_4, %c0_5] : memref<128x128xf32, #tpu.memory_space<vmem>>, vector<128x128xf32>
    %cst = arith.constant dense<0.000000e+00> : vector<8x128xf32>
    %6 = tpu.matmul %4, %5, %cst {dimension_numbers = #tpu.dot_dimension_numbers<[1], [0], [0], [1], [0, 0, 1, 1], [], []>} : vector<8x128xf32>, vector<128x128xf32>, vector<8x128xf32> -> vector<8x128xf32>
    %7 = arith.addf %3, %6 : vector<8x128xf32>
    %c0_6 = arith.constant 0 : index
    %c0_7 = arith.constant 0 : index
    %8 = vector.load %arg7[%c0_6, %c0_7] : memref<8x128xf32, #tpu.memory_space<vmem>>, vector<8x128xf32>
    tpu.vector_store %arg7[%c0_6, %c0_7], %7 {strides = array<i32>} : memref<8x128xf32, #tpu.memory_space<vmem>>, vector<8x128xf32>,
    %c0_i32_8 = arith.constant 0 : i32
    %9 = arith.cmpi eq, %arg2, %c0_i32_8 : i32
    %10 = arith.extui %9 : i1 to i32
    %c0_i32_9 = arith.constant 0 : i32
    %11 = arith.cmpi ne, %10, %c0_i32_9 : i32
    scf.if %11 {
      %c0_10 = arith.constant 0 : index
      %c0_11 = arith.constant 0 : index
      %12 = vector.load %arg7[%c0_10, %c0_11] : memref<8x128xf32, #tpu.memory_space<vmem>>, vector<8x128xf32>
      %c0_12 = arith.constant 0 : index
      %c0_13 = arith.constant 0 : index
      %13 = vector.load %arg5[%c0_12, %c0_13] : memref<1x128xf32, #tpu.memory_space<vmem>>, vector<1x128xf32>
      %14 = vector.broadcast %13 : vector<1x128xf32> to vector<8x128xf32>
      %15 = arith.addf %12, %14 : vector<8x128xf32>
      %cst_14 = arith.constant 0.000000e+00 : f32
      %16 = vector.broadcast %cst_14 : f32 to vector<8x128xf32>
      %17 = arith.subf %16, %15 : vector<8x128xf32>
      %18 = math.exp %17 : vector<8x128xf32>
      %cst_15 = arith.constant 1.000000e+00 : f32
      %19 = vector.broadcast %cst_15 : f32 to vector<8x128xf32>
      %20 = arith.addf %19, %18 : vector<8x128xf32>
      %21 = tpu.reciprocal %20 {approx = true} : vector<8x128xf32> -> vector<8x128xf32>
      %c0_16 = arith.constant 0 : index
      %c0_17 = arith.constant 0 : index
      %22 = vector.load %arg6[%c0_16, %c0_17] : memref<8x128xf32, #tpu.memory_space<vmem>>, vector<8x128xf32>
      tpu.vector_store %arg6[%c0_16, %c0_17], %21 {strides = array<i32>} : memref<8x128xf32, #tpu.memory_space<vmem>>, vector<8x128xf32>,
    } else {
    }
    return
  }
  func.func @transform_0(%arg0: i32, %arg1: i32, %arg2: i32) -> (i32, i32) {
    %c0_i32 = arith.constant 0 : i32
    return %arg0, %arg2 : i32, i32
  }
  func.func @transform_1(%arg0: i32, %arg1: i32, %arg2: i32) -> (i32, i32) {
    %c0_i32 = arith.constant 0 : i32
    return %arg2, %arg1 : i32, i32
  }
  func.func @transform_2(%arg0: i32, %arg1: i32, %arg2: i32) -> (i32, i32) {
    %c0_i32 = arith.constant 0 : i32
    %c0_i32_0 = arith.constant 0 : i32
    return %c0_i32, %arg1 : i32, i32
  }
  func.func @transform_3(%arg0: i32, %arg1: i32, %arg2: i32) -> (i32, i32) {
    %c0_i32 = arith.constant 0 : i32
    return %arg0, %arg1 : i32, i32
  }
}

</mosaic_0001>

<llo_original>
// kernel: slp_forward.1
$region0: #{slp_forward.1}
  #allocation0 [shape = 'u32[]', space=smem, size = 0x4, offset = 0x4, fixed_abs, tag = 'smem constant byte address 0x4 - core index']
  #allocation1 [shape = 'u32[72,128]{1,0:T(1,128)}', space=vmem, size = 0x9000, scoped, tag = 'internal scratch']
  #allocation2 [shape = 'f32[8,128]{1,0:T(8,128)}', space=vmem, size = 0x1000, scoped, tag = 'scratch operand']
  %s0 = inlined_call_operand.vmem [shape: f32[8,128], index: 0, kind: input, shape index: {}]
  %s1 = inlined_call_operand.hbm [shape: f32[128,128], index: 1, kind: input, shape index: {}]
  %s2 = inlined_call_operand.vmem [shape: f32[1,128], index: 2, kind: input, shape index: {}]
  %s3 = inlined_call_operand.hbm [shape: f32[8,128], index: 3, kind: output, shape index: {}]
  %s4 = sld [smem:[#allocation0]]
  $region34: #{slp_forward.1} parent=0
    _
  %s6 = ssub.s32 1, %s4
  %s7 = scalar_select 0, %s6, %s4
  $region1: #{slp_forward.1} parent=0
    #allocation3 [shape = 'u8[65536]{0}', space=vmem, size = 0x10000, scoped, tag = 'input window, operand 1, single buffered']
    #allocation4 [shape = 's32[1]{0}', space=sflag, size = 0x4, scoped, tag = 'scoped memory for slp_forward.1']
    #allocation5 [shape = 's32[1]{0}', space=sflag, size = 0x4, scoped, tag = 'scoped memory for slp_forward.1']
    #allocation6 [shape = 'u8[4096]{0}', space=vmem, size = 0x1000, scoped, tag = 'output window, operand 0, single buffered']
    %8 = vsyncpa [#allocation4], 0
    %9 = vsyncpa [#allocation5], 0
    // Predicated region
    $region2: #{slp_forward.1} parent=1 // pred_check
      _
    $region3: #{slp_forward.1} parent=1 // pred_check_branch
      %11 = sbr.rel (0) target = $region5
    $region4: #{slp_forward.1} parent=1 // pred_region
      _
    $region5: #{slp_forward.1} parent=1 // pred_fallthru
      _
    // Predicated region
    $region6: #{slp_forward.1} parent=1 // pred_check
      _
    $region7: #{slp_forward.1} parent=1 // pred_check_branch
      %13 = sbr.rel (0) target = $region9
    $region8: #{slp_forward.1} parent=1 // pred_region
      %15 = vsyncadd [#allocation4], 0
      %s16 = sshll.u32 %s1, 4
      %s17 = int_to_ptr.hbm [resolvable:$true] %s16
      %s18 = sshll.u32 [#allocation3], 4
      %s19 = int_to_ptr.vmem [resolvable:$true] %s18
      %24 = dma.hbm_to_vmem [thread:$0]  %s17, 2048, %s19, [#allocation4], 128, 128, 8
    $region9: #{slp_forward.1} parent=1 // pred_fallthru
      _
    // Predicated region
    $region10: #{slp_forward.1} parent=1 // pred_check
      _
    $region11: #{slp_forward.1} parent=1 // pred_check_branch
      %26 = sbr.rel (0) target = $region13
    $region12: #{slp_forward.1} parent=1 // pred_region
      _
    $region13: #{slp_forward.1} parent=1 // pred_fallthru
      _
    // Predicated region
    $region14: #{slp_forward.1} parent=1 // pred_check
      _
    $region15: #{slp_forward.1} parent=1 // pred_check_branch
      %28 = sbr.rel (0) target = $region17
    $region16: #{slp_forward.1} parent=1 // pred_region
      %30 = dma.done [#allocation4], 2048
    $region17: #{slp_forward.1} parent=1 // pred_fallthru
      _
    %p31 = scmp.eq.s32.totalorder 0, 0
    // Predicated region
    $region18: #{slp_forward.1} parent=1 // pred_check
      %p32 = pneg %p31
    $region19: #{slp_forward.1} parent=1 // pred_check_branch
      %34 = sbr.rel (%p32) target = $region21
    $region20: #{slp_forward.1} parent=1 // pred_region
      %35 = vst [vmem:[#allocation2] sm:$0xff] 0.0
    $region21: #{slp_forward.1} parent=1 // pred_fallthru
      _
    %v36 = vld [vmem:[#allocation2] sm:$0xff]
    %v37 = vld [vmem:[%s0] sm:$0xff]
    %v38 = vld [vmem:[#allocation3] sm:$0xff]
    %v39 = vld [vmem:[#allocation3 + $0x8] sm:$0xff]
    %v40 = vld [vmem:[#allocation3 + $0x10] sm:$0xff]
    %v41 = vld [vmem:[#allocation3 + $0x18] sm:$0xff]
    %v42 = vld [vmem:[#allocation3 + $0x20] sm:$0xff]
    %v43 = vld [vmem:[#allocation3 + $0x28] sm:$0xff]
    %v44 = vld [vmem:[#allocation3 + $0x30] sm:$0xff]
    %v45 = vld [vmem:[#allocation3 + $0x38] sm:$0xff]
    %v46 = vld [vmem:[#allocation3 + $0x40] sm:$0xff]
    %v47 = vld [vmem:[#allocation3 + $0x48] sm:$0xff]
    %v48 = vld [vmem:[#allocation3 + $0x50] sm:$0xff]
    %v49 = vld [vmem:[#allocation3 + $0x58] sm:$0xff]
    %v50 = vld [vmem:[#allocation3 + $0x60] sm:$0xff]
    %v51 = vld [vmem:[#allocation3 + $0x68] sm:$0xff]
    %v52 = vld [vmem:[#allocation3 + $0x70] sm:$0xff]
    %v53 = vld [vmem:[#allocation3 + $0x78] sm:$0xff]
    %54 = vmatpush.msra.mxu0 %v53
    %55 = vmatpush.msra.mxu0 %v52
    %56 = vmatpush.msra.mxu0 %v51
    %57 = vmatpush.msra.mxu0 %v50
    %58 = vmatpush.msra.mxu0 %v49
    %59 = vmatpush.msra.mxu0 %v48
    %60 = vmatpush.msra.mxu0 %v47
    %61 = vmatpush.msra.mxu0 %v46
    %62 = vmatpush.msra.mxu0 %v45
    %63 = vmatpush.msra.mxu0 %v44
    %64 = vmatpush.msra.mxu0 %v43
    %65 = vmatpush.msra.mxu0 %v42
    %66 = vmatpush.msra.mxu0 %v41
    %67 = vmatpush.msra.mxu0 %v40
    %68 = vmatpush.msra.mxu0 %v39
    %69 = vmatpush.msra.mxu0 %v38
    %70 = vmatmul.f32.gmra.mxu0 %v37
    %v71 = vpop.f32.mrf.mxu0
    %v72 = vadd.f32 0.0, %v71
    %73 = vdwg.mxu0
    %v74 = vadd.f32 %v36, %v72
    %75 = vst [vmem:[#allocation2] sm:$0xff] %v74
    // Predicated region
    $region22: #{slp_forward.1} parent=1 // pred_check
      %p76 = pneg %p31
    $region23: #{slp_forward.1} parent=1 // pred_check_branch
      %78 = sbr.rel (%p76) target = $region25
    $region24: #{slp_forward.1} parent=1 // pred_region
      %v79 = vld [vmem:[#allocation2] sm:$0xff]
      %v80 = vld [vmem:[%s2] sm:$0x1]
      %v82 = vperm.slane %v80, 0
      %v84 = vadd.f32 %v79, %v82
      %v85 = vsub.f32 0.0, %v84
      %v86 = vmul.f32 %v85, 1.442695
      %v87 = vpow.pop %v86
      %v88 = vadd.f32 %v87, 1.0
      %v89 = vrcp.pop %v88
      %90 = vst [vmem:[#allocation6] sm:$0xff] %v89
    $region25: #{slp_forward.1} parent=1 // pred_fallthru
      _
    // Predicated region
    $region26: #{slp_forward.1} parent=1 // pred_check
      _
    $region27: #{slp_forward.1} parent=1 // pred_check_branch
      %92 = sbr.rel (0) target = $region29
    $region28: #{slp_forward.1} parent=1 // pred_region
      %94 = vsyncadd [#allocation5], 0
      %s96 = sshll.u32 [#allocation6], 4
      %s97 = int_to_ptr.vmem [resolvable:$true] %s96
      %s98 = sshll.u32 %s3, 4
      %s99 = int_to_ptr.hbm [resolvable:$true] %s98
      %101 = dma.vmem_to_hbm [thread:$0]  %s97, 128, %s99, [#allocation5]
    $region29: #{slp_forward.1} parent=1 // pred_fallthru
      _
    // Predicated region
    $region30: #{slp_forward.1} parent=1 // pred_check
      _
    $region31: #{slp_forward.1} parent=1 // pred_check_branch
      %103 = sbr.rel (0) target = $region33
    $region32: #{slp_forward.1} parent=1 // pred_region
      %105 = dma.done [#allocation5], 128
    $region33: #{slp_forward.1} parent=1 // pred_fallthru
      _
    %106 = vsyncpa [#allocation4], 1
    %107 = vsyncpa [#allocation5], 1

</llo_original>
